<compile_context>
chip_gen: v5e
topology: v5e:2x2
jax: 0.10.0
libtpu: 0.0.40
codegen_flags: <defaults>
</compile_context>

<pallas_src>
import numpy as np
import jax
import jax.numpy as jnp
from jax.experimental import pallas as pl
from jax.experimental.pallas import tpu as pltpu

FILT_8TAP = np.array([-1.0, 4.0, -11.0, 40.0, 40.0, -11.0, 4.0, -1.0], np.float32) / 64.0
PAD_L, PAD_R = 3, 4  # p, p+1 with p = (8-1)//2


# --------------------------- constant weight matrices ---------------------------
def _reflect_conv_matrix(n: int) -> np.ndarray:
    """M (n, n): for a row vector x (len n), (x @ M)[j] = 8-tap conv of reflect-padded x."""
    assert n > PAD_R, "reflect pad requires spatial dim > 4"
    M = np.zeros((n, n), np.float32)
    for j in range(n):
        for k in range(8):
            idx = j + k - PAD_L
            if idx < 0:
                idx = -idx                      # left reflect (edge not repeated)
            elif idx >= n:
                idx = 2 * (n - 1) - idx         # right reflect
            M[idx, j] += FILT_8TAP[k]
    return M


def _interleave_conv_matrix(n: int) -> np.ndarray:
    """U (n, 2n): x @ U = interleave(x, conv_reflect_8tap(x)) along the last axis."""
    M = _reflect_conv_matrix(n)
    U = np.zeros((n, 2 * n), np.float32)
    U[:, 1::2] = M                              # odd output columns: conv
    U[np.arange(n), 2 * np.arange(n)] = 1.0     # even output columns: passthrough
    return U


def _block_diag(M: np.ndarray, p: int) -> np.ndarray:
    """Block-diagonal with p copies of M on the diagonal."""
    n = M.shape[0]
    out = np.zeros((p * n, p * n), np.float32)
    for i in range(p):
        out[i * n:(i + 1) * n, i * n:(i + 1) * n] = M
    return out


# ----------------------------------- kernel -------------------------------------
def _make_kernel(w: int):
    w2 = 2 * w

    def kernel(x_ref, mwup_ref, mbd_ref, out_ref):
        # x_ref:    (P*h, w)      -- P planes flattened into the matmul M dim
        # mwup_ref: (w, 2w)       -- horizontal interleave-conv matrix (resident weights)
        # mbd_ref:  (P*h, P*h)    -- block-diagonal Mh^T (vertical conv, all planes at once)
        # out_ref:  (P*h, 4w)     -- [even output row | odd output row]
        even = jnp.dot(x_ref[...], mwup_ref[...],
                       preferred_element_type=jnp.float32)            # (P*h, 2w)
        out_ref[:, 0:w2] = even                                        # image rows 2i
        out_ref[:, w2:] = jnp.dot(mbd_ref[...], even,
                                  preferred_element_type=jnp.float32)  # image rows 2i+1

    return kernel


# --------------------------- sizing / VMEM accounting ----------------------------
def _vmem_capacity_bytes() -> int:
    try:
        info = pltpu.get_tpu_info()
        cap = int(getattr(info, "vmem_capacity_bytes", 0) or 0)
        if cap > 0:
            return cap
    except Exception:
        pass
    return 64 * 1024 * 1024  # conservative default = v7x per-TensorCore VMEM


def _vmem_bytes_estimate(p_planes: int, h: int, w: int) -> int:
    itm = 4  # f32
    rows = p_planes * h
    x_blk = rows * w * itm * 2                  # double-buffered input block
    o_blk = rows * 4 * w * itm * 2              # double-buffered output block
    weights = (w * 2 * w + rows * rows) * itm * 2   # conservative (covers 2-buf fallback)
    even_tmp = rows * 2 * w * itm               # 'even' temporary inside the kernel
    return x_blk + o_blk + weights + even_tmp + (1 << 20)  # + headroom


def _select_p_planes(n_planes: int, h: int, w: int,
                     vmem_budget: int, max_rows: int) -> int:
    divisors = [d for d in range(1, n_planes + 1) if n_planes % d == 0]
    # Sublane extent (d*h) must be a multiple of 8 unless the block spans the full dim.
    legal = [d for d in divisors if d == n_planes or (d * h) % 8 == 0]
    fitting = [d for d in legal
               if d * h <= max_rows and _vmem_bytes_estimate(d, h, w) <= vmem_budget]
    if fitting:
        # Prefer >= 2 grid steps so v7x's second TensorCore gets work (near-free on
        # v5e/v6e: per-step overhead is ~0.35 us).
        multi_step = [d for d in fitting if n_planes // d >= 2]
        return max(multi_step) if multi_step else max(fitting)
    # Nothing fits the budget: use the smallest legal block to minimize VMEM pressure.
    # TODO(synk): row-tile within a plane (3/4-row halo) for planes too large to fit
    #             even at p_planes == 1 (e.g. 1080p on v7x).
    return min(legal)


# ----------------------------------- wrapper -------------------------------------
def upsampler_8tap(im: jnp.ndarray, *, max_rows_per_step: int = 512) -> jnp.ndarray:
    """Pallas equivalent of Upsampler_8tap.forward. im: (b, 3, h, w) float32."""
    b, c, h, w = im.shape
    assert c == 3, "groups=3 conv requires 3 channels"
    assert h > PAD_R and w > PAD_R, "reflect pad requires h, w > 4"
    im = im.astype(jnp.float32)
    n_planes = b * c

    vmem_cap = _vmem_capacity_bytes()
    vmem_budget = int(0.60 * vmem_cap)
    p_planes = _select_p_planes(n_planes, h, w, vmem_budget, max_rows_per_step)
    rows = p_planes * h
    steps = n_planes // p_planes

    mwup = jnp.asarray(_interleave_conv_matrix(w))                         # (w, 2w)
    mbd = jnp.asarray(_block_diag(_reflect_conv_matrix(h).T, p_planes))    # (P*h, P*h)

    x2 = im.reshape(n_planes * h, w)                                       # free reshape

    est = _vmem_bytes_estimate(p_planes, h, w)
    vmem_limit = int(min(max(2 * est, 32 << 20), int(0.875 * vmem_cap), 100 << 20))

    flops = steps * (2 * rows * w * (2 * w) + 2 * rows * rows * (2 * w))
    bytes_accessed = 4 * (n_planes * h * w          # input
                          + n_planes * h * 4 * w    # output
                          + w * 2 * w + rows * rows)  # weights
    cost = pl.CostEstimate(flops=int(flops), transcendentals=0,
                           bytes_accessed=int(bytes_accessed))

    out_shape = jax.ShapeDtypeStruct((n_planes * h, 4 * w), jnp.float32)
    x_spec = pl.BlockSpec((rows, w), lambda g: (g, 0))
    out_spec = pl.BlockSpec((rows, 4 * w), lambda g: (g, 0))

    def _run(single_buffer_weights: bool):
        wkw = dict(pipeline_mode=pl.Buffered(1)) if single_buffer_weights else {}
        in_specs = [
            x_spec,
            pl.BlockSpec((w, 2 * w), lambda g: (0, 0), **wkw),      # resident weights
            pl.BlockSpec((rows, rows), lambda g: (0, 0), **wkw),    # resident weights
        ]
        return pl.pallas_call(
            _make_kernel(w),
            out_shape=out_shape,
            grid=(steps,),
            in_specs=in_specs,
            out_specs=out_spec,
            compiler_params=pltpu.CompilerParams(
                dimension_semantics=("parallel",),
                vmem_limit_bytes=vmem_limit,
            ),
            cost_estimate=cost,
        )(x2, mwup, mbd)

    try:
        out = _run(True)          # single-buffered constant weights
    except Exception:
        out = _run(False)         # fallback: default (double-buffered) weight specs

    # out[p*h+i, 0:2w] = output row 2i, out[p*h+i, 2w:4w] = output row 2i+1.
    # Both reshapes below are contiguous (free) in XLA.
    return out.reshape(b, c, h, 2, 2 * w).reshape(b, c, 2 * h, 2 * w)


# ---------------- pure-JAX reference (mirrors the PyTorch forward) ----------------
def _ref_conv_last(x):
    pad = [(0, 0)] * (x.ndim - 1) + [(PAD_L, PAD_R)]
    xp = jnp.pad(x, pad, mode="reflect")
    n = x.shape[-1]
    out = jnp.zeros_like(x)
    for k in range(8):
        out = out + FILT_8TAP[k] * xp[..., k:k + n]
    return out


def _ref_forward(im):
    b, c, h, w = im.shape
    row = _ref_conv_last(im)
    col = jnp.swapaxes(_ref_conv_last(jnp.swapaxes(im, 2, 3)), 2, 3)
    cross = _ref_conv_last(col)
    up = jnp.zeros((b, c, 2 * h, 2 * w), jnp.float32)
    up = up.at[:, :, ::2, ::2].set(im)
    up = up.at[:, :, ::2, 1::2].set(row)
    up = up.at[:, :, 1::2, ::2].set(col)
    up = up.at[:, :, 1::2, 1::2].set(cross)
    return up


if __name__ == "__main__":
    key = jax.random.PRNGKey(0)
    b, c, h, w = 2, 3, 16, 16
    im = jax.random.normal(key, (b, c, h, w), dtype=jnp.float32)

    out = upsampler_8tap(im)
    out = jax.block_until_ready(out)

    ref = _ref_forward(im)
    assert out.shape == (b, c, 2 * h, 2 * w)
    np.testing.assert_allclose(np.asarray(out), np.asarray(ref), rtol=5e-5, atol=5e-5)

    print("KERNEL_OK")
</pallas_src>

<mosaic_0001>
module attributes {stable_mosaic.version = 11 : i64} {
  func.func @kernel(%arg0: i32, %arg1: memref<48x16xf32, #tpu.memory_space<vmem>>, %arg2: memref<16x32xf32, #tpu.memory_space<vmem>>, %arg3: memref<48x48xf32, #tpu.memory_space<vmem>>, %arg4: memref<48x64xf32, #tpu.memory_space<vmem>>) attributes {dimension_semantics = [#tpu.dimension_semantics<parallel>], iteration_bounds = array<i64: 2>, scalar_prefetch = 0 : i64, scratch_operands = 0 : i64, tpu.core_type = #tpu.core_type<tc>, window_params = [{transform_indices = @transform_0, window_bounds = array<i64: 48, 16>}, {pipeline_mode = #tpu.pipeline_mode<synchronous>, transform_indices = @transform_1, window_bounds = array<i64: 16, 32>}, {pipeline_mode = #tpu.pipeline_mode<synchronous>, transform_indices = @transform_2, window_bounds = array<i64: 48, 48>}, {transform_indices = @transform_3, window_bounds = array<i64: 48, 64>}]} {
    %c0 = arith.constant 0 : index
    %c0_0 = arith.constant 0 : index
    %0 = vector.load %arg1[%c0, %c0_0] : memref<48x16xf32, #tpu.memory_space<vmem>>, vector<48x16xf32>
    %c0_1 = arith.constant 0 : index
    %c0_2 = arith.constant 0 : index
    %1 = vector.load %arg2[%c0_1, %c0_2] : memref<16x32xf32, #tpu.memory_space<vmem>>, vector<16x32xf32>
    %cst = arith.constant dense<0.000000e+00> : vector<48x32xf32>
    %2 = tpu.matmul %0, %1, %cst {dimension_numbers = #tpu.dot_dimension_numbers<[1], [0], [0], [1], [0, 0, 1, 1], [], []>} : vector<48x16xf32>, vector<16x32xf32>, vector<48x32xf32> -> vector<48x32xf32>
    %c0_3 = arith.constant 0 : index
    %c0_4 = arith.constant 0 : index
    %3 = vector.load %arg4[%c0_3, %c0_4] : memref<48x64xf32, #tpu.memory_space<vmem>>, vector<48x32xf32>
    tpu.vector_store %arg4[%c0_3, %c0_4], %2 {strides = array<i32>} : memref<48x64xf32, #tpu.memory_space<vmem>>, vector<48x32xf32>,
    %c0_5 = arith.constant 0 : index
    %c0_6 = arith.constant 0 : index
    %4 = vector.load %arg3[%c0_5, %c0_6] : memref<48x48xf32, #tpu.memory_space<vmem>>, vector<48x48xf32>
    %cst_7 = arith.constant dense<0.000000e+00> : vector<48x32xf32>
    %5 = tpu.matmul %4, %2, %cst_7 {dimension_numbers = #tpu.dot_dimension_numbers<[1], [0], [0], [1], [0, 0, 1, 1], [], []>} : vector<48x48xf32>, vector<48x32xf32>, vector<48x32xf32> -> vector<48x32xf32>
    %c0_8 = arith.constant 0 : index
    %c32 = arith.constant 32 : index
    %6 = vector.load %arg4[%c0_8, %c32] : memref<48x64xf32, #tpu.memory_space<vmem>>, vector<48x32xf32>
    tpu.vector_store %arg4[%c0_8, %c32], %5 {strides = array<i32>} : memref<48x64xf32, #tpu.memory_space<vmem>>, vector<48x32xf32>,
    return
  }
  func.func @transform_0(%arg0: i32) -> (i32, i32) {
    %c0_i32 = arith.constant 0 : i32
    %c0_i32_0 = arith.constant 0 : i32
    return %arg0, %c0_i32 : i32, i32
  }
  func.func @transform_1(%arg0: i32) -> (i32, i32) {
    %c0_i32 = arith.constant 0 : i32
    %c0_i32_0 = arith.constant 0 : i32
    %c0_i32_1 = arith.constant 0 : i32
    return %c0_i32, %c0_i32_0 : i32, i32
  }
  func.func @transform_2(%arg0: i32) -> (i32, i32) {
    %c0_i32 = arith.constant 0 : i32
    %c0_i32_0 = arith.constant 0 : i32
    %c0_i32_1 = arith.constant 0 : i32
    return %c0_i32, %c0_i32_0 : i32, i32
  }
  func.func @transform_3(%arg0: i32) -> (i32, i32) {
    %c0_i32 = arith.constant 0 : i32
    %c0_i32_0 = arith.constant 0 : i32
    return %arg0, %c0_i32 : i32, i32
  }
}

module attributes {stable_mosaic.version = 11 : i64} {
  func.func @kernel(%arg0: i32, %arg1: memref<48x16xf32, #tpu.memory_space<vmem>>, %arg2: memref<16x32xf32, #tpu.memory_space<vmem>>, %arg3: memref<48x48xf32, #tpu.memory_space<vmem>>, %arg4: memref<48x64xf32, #tpu.memory_space<vmem>>) attributes {dimension_semantics = [#tpu.dimension_semantics<parallel>], iteration_bounds = array<i64: 2>, scalar_prefetch = 0 : i64, scratch_operands = 0 : i64, tpu.core_type = #tpu.core_type<tc>, window_params = [{transform_indices = @transform_0, window_bounds = array<i64: 48, 16>}, {pipeline_mode = #tpu.pipeline_mode<synchronous>, transform_indices = @transform_1, window_bounds = array<i64: 16, 32>}, {pipeline_mode = #tpu.pipeline_mode<synchronous>, transform_indices = @transform_2, window_bounds = array<i64: 48, 48>}, {transform_indices = @transform_3, window_bounds = array<i64: 48, 64>}]} {
    %c0 = arith.constant 0 : index
    %c0_0 = arith.constant 0 : index
    %0 = vector.load %arg1[%c0, %c0_0] : memref<48x16xf32, #tpu.memory_space<vmem>>, vector<48x16xf32>
    %c0_1 = arith.constant 0 : index
    %c0_2 = arith.constant 0 : index
    %1 = vector.load %arg2[%c0_1, %c0_2] : memref<16x32xf32, #tpu.memory_space<vmem>>, vector<16x32xf32>
    %cst = arith.constant dense<0.000000e+00> : vector<48x32xf32>
    %2 = tpu.matmul %0, %1, %cst {dimension_numbers = #tpu.dot_dimension_numbers<[1], [0], [0], [1], [0, 0, 1, 1], [], []>} : vector<48x16xf32>, vector<16x32xf32>, vector<48x32xf32> -> vector<48x32xf32>
    %c0_3 = arith.constant 0 : index
    %c0_4 = arith.constant 0 : index
    %3 = vector.load %arg4[%c0_3, %c0_4] : memref<48x64xf32, #tpu.memory_space<vmem>>, vector<48x32xf32>
    tpu.vector_store %arg4[%c0_3, %c0_4], %2 {strides = array<i32>} : memref<48x64xf32, #tpu.memory_space<vmem>>, vector<48x32xf32>,
    %c0_5 = arith.constant 0 : index
    %c0_6 = arith.constant 0 : index
    %4 = vector.load %arg3[%c0_5, %c0_6] : memref<48x48xf32, #tpu.memory_space<vmem>>, vector<48x48xf32>
    %cst_7 = arith.constant dense<0.000000e+00> : vector<48x32xf32>
    %5 = tpu.matmul %4, %2, %cst_7 {dimension_numbers = #tpu.dot_dimension_numbers<[1], [0], [0], [1], [0, 0, 1, 1], [], []>} : vector<48x48xf32>, vector<48x32xf32>, vector<48x32xf32> -> vector<48x32xf32>
    %c0_8 = arith.constant 0 : index
    %c32 = arith.constant 32 : index
    %6 = vector.load %arg4[%c0_8, %c32] : memref<48x64xf32, #tpu.memory_space<vmem>>, vector<48x32xf32>
    tpu.vector_store %arg4[%c0_8, %c32], %5 {strides = array<i32>} : memref<48x64xf32, #tpu.memory_space<vmem>>, vector<48x32xf32>,
    return
  }
  func.func @transform_0(%arg0: i32) -> (i32, i32) {
    %c0_i32 = arith.constant 0 : i32
    %c0_i32_0 = arith.constant 0 : i32
    return %arg0, %c0_i32 : i32, i32
  }
  func.func @transform_1(%arg0: i32) -> (i32, i32) {
    %c0_i32 = arith.constant 0 : i32
    %c0_i32_0 = arith.constant 0 : i32
    %c0_i32_1 = arith.constant 0 : i32
    return %c0_i32, %c0_i32_0 : i32, i32
  }
  func.func @transform_2(%arg0: i32) -> (i32, i32) {
    %c0_i32 = arith.constant 0 : i32
    %c0_i32_0 = arith.constant 0 : i32
    %c0_i32_1 = arith.constant 0 : i32
    return %c0_i32, %c0_i32_0 : i32, i32
  }
  func.func @transform_3(%arg0: i32) -> (i32, i32) {
    %c0_i32 = arith.constant 0 : i32
    %c0_i32_0 = arith.constant 0 : i32
    return %arg0, %c0_i32 : i32, i32
  }
}

</mosaic_0001>

<llo_original>
// kernel: tpu_custom_call.1
$region0: #{tpu_custom_call.1}
  #allocation0 [shape = 'u32[]', space=smem, size = 0x4, offset = 0x4, fixed_abs, tag = 'smem constant byte address 0x4 - core index']
  #allocation1 [shape = 'u32[72,128]{1,0:T(1,128)}', space=vmem, size = 0x9000, scoped, tag = 'internal scratch']
  %s0 = inlined_call_operand.vmem [shape: f32[96,16], index: 0, kind: input, shape index: {}]
  %s1 = inlined_call_operand.vmem [shape: f32[16,32], index: 1, kind: input, shape index: {}]
  %s2 = inlined_call_operand.vmem [shape: f32[48,48], index: 2, kind: input, shape index: {}]
  %s3 = inlined_call_operand.vmem [shape: f32[96,64], index: 3, kind: output, shape index: {}]
  %s4 = sld [smem:[#allocation0]]
  $region45: #{tpu_custom_call.1} parent=0
    _
  %s6 = ssub.s32 1, %s4
  %s7 = scalar_select 0, %s6, %s4
  loop: start=0, step=1, limit=4
  $region2: #{tpu_custom_call.1} parent=0 // loop_pre_header
    _
  $region3: #{tpu_custom_call.1} parent=0 // loop_header
    %s9 = sphi 0, %s13
    %p10 = scmp.ge.s32.totalorder %s9, 4
    %s19 = sphi 0, %s21
    %s22 = sphi 0, %s19
    %s23 = sphi 0, %s22
    %s39 = sphi 0, %s23
    %s43 = sphi 0, %s43
    %s45 = sphi 0, %s43
    %s46 = sphi 0, %s45
    %s60 = sphi 0, %s46
    %s64 = sphi 0, %s64
    %s66 = sphi 0, %s64
    %s67 = sphi 0, %s66
    %s81 = sphi 0, %s67
    %s87 = sphi 0, %s89
    %s90 = sphi 0, %s87
    %s91 = sphi 0, %s90
    %s107 = sphi 0, %s91
  $region4: #{tpu_custom_call.1} parent=0 // loop_header_branch
    %12 = sbr.rel (%p10) target = $region8
  $region5: #{tpu_custom_call.1} parent=0 // loop_body
    %s14 = ssub.s32 %s9, 1
    %s15 = ssub.s32 %s9, 2
    %s16 = sadd.s32 %s9, 1
    %s17 = ssub.s32 %s9, %s16
    %p18 = scmp.eq.s32.totalorder %s17, 0
    %s20 = sadd.s32 %s19, 1
    %s21 = scalar_select %p18, %s19, %s20
    %p24 = pneg %p18
    %p25 = scmp.eq.s32.totalorder %s9, 1
    %p26 = por %p24, %p25
    %p27 = scmp.ne.s32.totalorder %s19, %s22
    %p28 = scmp.eq.s32.totalorder %s9, 0
    %p29 = por %p27, %p28
    %p30 = scmp.ne.s32.totalorder %s19, %s22
    %p31 = scmp.eq.s32.totalorder %s14, 1
    %p32 = por %p30, %p31
    %p33 = scmp.ne.s32.totalorder %s22, %s23
    %p34 = scmp.eq.s32.totalorder %s14, 0
    %p35 = por %p33, %p34
    %p36 = scmp.ne.s32.totalorder %s22, %s23
    %p37 = scmp.eq.s32.totalorder %s15, 1
    %p38 = por %p36, %p37
    %p40 = scmp.ne.s32.totalorder %s23, %s39
    %p41 = scmp.eq.s32.totalorder %s15, 0
    %p42 = por %p40, %p41
    %s44 = sadd.s32 %s43, 1
    %p47 = scmp.eq.s32.totalorder %s9, 1
    %p48 = scmp.ne.s32.totalorder %s43, %s45
    %p49 = scmp.eq.s32.totalorder %s9, 0
    %p50 = por %p48, %p49
    %p51 = scmp.ne.s32.totalorder %s43, %s45
    %p52 = scmp.eq.s32.totalorder %s14, 1
    %p53 = por %p51, %p52
    %p54 = scmp.ne.s32.totalorder %s45, %s46
    %p55 = scmp.eq.s32.totalorder %s14, 0
    %p56 = por %p54, %p55
    %p57 = scmp.ne.s32.totalorder %s45, %s46
    %p58 = scmp.eq.s32.totalorder %s15, 1
    %p59 = por %p57, %p58
    %p61 = scmp.ne.s32.totalorder %s46, %s60
    %p62 = scmp.eq.s32.totalorder %s15, 0
    %p63 = por %p61, %p62
    %s65 = sadd.s32 %s64, 1
    %p68 = scmp.eq.s32.totalorder %s9, 1
    %p69 = scmp.ne.s32.totalorder %s64, %s66
    %p70 = scmp.eq.s32.totalorder %s9, 0
    %p71 = por %p69, %p70
    %p72 = scmp.ne.s32.totalorder %s64, %s66
    %p73 = scmp.eq.s32.totalorder %s14, 1
    %p74 = por %p72, %p73
    %p75 = scmp.ne.s32.totalorder %s66, %s67
    %p76 = scmp.eq.s32.totalorder %s14, 0
    %p77 = por %p75, %p76
    %p78 = scmp.ne.s32.totalorder %s66, %s67
    %p79 = scmp.eq.s32.totalorder %s15, 1
    %p80 = por %p78, %p79
    %p82 = scmp.ne.s32.totalorder %s67, %s81
    %p83 = scmp.eq.s32.totalorder %s15, 0
    %p84 = por %p82, %p83
    %s85 = ssub.s32 %s9, %s16
    %p86 = scmp.eq.s32.totalorder %s85, 0
    %s88 = sadd.s32 %s87, 1
    %s89 = scalar_select %p86, %s87, %s88
    %p92 = pneg %p86
    %p93 = scmp.eq.s32.totalorder %s9, 1
    %p94 = por %p92, %p93
    %p95 = scmp.ne.s32.totalorder %s87, %s90
    %p96 = scmp.eq.s32.totalorder %s9, 0
    %p97 = por %p95, %p96
    %p98 = scmp.ne.s32.totalorder %s87, %s90
    %p99 = scmp.eq.s32.totalorder %s14, 1
    %p100 = por %p98, %p99
    %p101 = scmp.ne.s32.totalorder %s90, %s91
    %p102 = scmp.eq.s32.totalorder %s14, 0
    %p103 = por %p101, %p102
    %p104 = scmp.ne.s32.totalorder %s90, %s91
    %p105 = scmp.eq.s32.totalorder %s15, 1
    %p106 = por %p104, %p105
    %p108 = scmp.ne.s32.totalorder %s91, %s107
    %p109 = scmp.eq.s32.totalorder %s15, 0
    %p110 = por %p108, %p109
    %p111 = scmp.le.s32.totalorder 1, %s9
    %p112 = scmp.lt.s32.totalorder %s9, 3
    %p113 = pnand %p111, %p112
    %p114 = pneg %p113
    // Predicated region
    $region9: #{tpu_custom_call.1} parent=5 // pred_check
      _
    $region10: #{tpu_custom_call.1} parent=5 // pred_check_branch
      %116 = sbr.rel (%p113) target = $region12
    $region11: #{tpu_custom_call.1} parent=5 // pred_region
      %s117 = ssub.s32 %s9, 1
      // Predicated region
      $region13: #{tpu_custom_call.1} parent=11 // pred_check
        %p118 = pneg %p56
      $region14: #{tpu_custom_call.1} parent=11 // pred_check_branch
        %120 = sbr.rel (%p118) target = $region16
      $region15: #{tpu_custom_call.1} parent=11 // pred_region
        _
      $region16: #{tpu_custom_call.1} parent=11 // pred_fallthru
        _
      // Predicated region
      $region17: #{tpu_custom_call.1} parent=11 // pred_check
        %p121 = pneg %p77
      $region18: #{tpu_custom_call.1} parent=11 // pred_check_branch
        %123 = sbr.rel (%p121) target = $region20
      $region19: #{tpu_custom_call.1} parent=11 // pred_region
        _
      $region20: #{tpu_custom_call.1} parent=11 // pred_fallthru
        _
    $region12: #{tpu_custom_call.1} parent=5 // pred_fallthru
      _
    %p124 = scmp.lt.s32.totalorder %s9, 2
    // Predicated region
    $region21: #{tpu_custom_call.1} parent=5 // pred_check
      %p125 = pneg %p124
    $region22: #{tpu_custom_call.1} parent=5 // pred_check_branch
      %127 = sbr.rel (%p125) target = $region24
    $region23: #{tpu_custom_call.1} parent=5 // pred_region
      // Predicated region
      $region25: #{tpu_custom_call.1} parent=23 // pred_check
        %p128 = pneg %p29
      $region26: #{tpu_custom_call.1} parent=23 // pred_check_branch
        %130 = sbr.rel (%p128) target = $region28
      $region27: #{tpu_custom_call.1} parent=23 // pred_region
        %s131 = smul.u32 6, %s9
        %p132 = scmp.lt.s32.totalorder %s131, 11
        %s133 = scalar_select %p132, %s131, 11
        %s134 = smul.addr %s133, 8
        %s135 = scalar_lea.vmem %s0, %s134
        %s136 = smul.u32 6, %s9
      $region28: #{tpu_custom_call.1} parent=23 // pred_fallthru
        _
    $region24: #{tpu_custom_call.1} parent=5 // pred_fallthru
      _
    %p137 = scmp.le.s32.totalorder 1, %s9
    %p138 = scmp.lt.s32.totalorder %s9, 3
    %p139 = pnand %p137, %p138
    %p140 = pneg %p139
    // Predicated region
    $region29: #{tpu_custom_call.1} parent=5 // pred_check
      _
    $region30: #{tpu_custom_call.1} parent=5 // pred_check_branch
      %142 = sbr.rel (%p139) target = $region32
    $region31: #{tpu_custom_call.1} parent=5 // pred_region
      %s143 = ssub.s32 %s9, 1
      %s144 = smul.u32 6, %s14
      %p145 = scmp.lt.s32.totalorder %s144, 11
      %s146 = scalar_select %p145, %s144, 11
      %s147 = smul.addr %s146, 8
      %s148 = scalar_lea.vmem %s0, %s147
      %p149 = pneg %p35
      %p150 = pneg %p32
      %p151 = pneg %p56
      %p152 = pneg %p53
      %p153 = pneg %p77
      %p154 = pneg %p74
      %p155 = pneg %p103
      %p156 = pneg %p100
      %s157 = smul.u32 6, %s14
      %p158 = scmp.lt.s32.totalorder %s157, 11
      %s159 = scalar_select %p158, %s157, 11
      %s160 = smul.addr %s159, 8
      %s161 = scalar_lea.vmem %s3, %s160
      %s162 = smul.u32 6, %s14
      %p163 = scmp.lt.s32.totalorder %s162, 11
      %s164 = scalar_select %p163, %s162, 11
      %s165 = smul.addr %s164, 8
      %s166 = scalar_lea.vmem %s0, %s165
      %s167 = smul.u32 6, %s14
      %s168 = smul.u32 6, %s14
      %p169 = scmp.lt.s32.totalorder %s168, 11
      %s170 = scalar_select %p169, %s168, 11
      %s171 = smul.addr %s170, 8
      %s172 = scalar_lea.vmem %s3, %s171
      %s173 = smul.u32 6, %s14
      %v174 = vld [vmem:[%s166] sm:$0xff]
      %v175 = vld [vmem:[%s166 + $0x8] sm:$0xff]
      %v176 = vld [vmem:[%s166 + $0x10] sm:$0xff]
      %v177 = vld [vmem:[%s166 + $0x18] sm:$0xff]
      %v178 = vld [vmem:[%s166 + $0x20] sm:$0xff]
      %v179 = vld [vmem:[%s166 + $0x28] sm:$0xff]
      %v180 = vld [vmem:[%s1] sm:$0xff]
      %v181 = vld [vmem:[%s1 + $0x8] sm:$0xff]
      %vm182 = vcmask 130048
      %v184 = vsel %vm182, %v174, 0
      %v187 = vsel %vm182, %v175, 0
      %v190 = vsel %vm182, %v176, 0
      %v193 = vsel %vm182, %v177, 0
      %v196 = vsel %vm182, %v178, 0
      %v199 = vsel %vm182, %v179, 0
      %201 = vmatpush.msra.mxu0 0.0
      %202 = vmatpush.msra.mxu0 0.0
      %203 = vmatpush.msra.mxu0 0.0
      %204 = vmatpush.msra.mxu0 0.0
      %205 = vmatpush.msra.mxu0 0.0
      %206 = vmatpush.msra.mxu0 0.0
      %207 = vmatpush.msra.mxu0 0.0
      %208 = vmatpush.msra.mxu0 0.0
      %209 = vmatpush.msra.mxu0 0.0
      %210 = vmatpush.msra.mxu0 0.0
      %211 = vmatpush.msra.mxu0 0.0
      %212 = vmatpush.msra.mxu0 0.0
      %213 = vmatpush.msra.mxu0 0.0
      %214 = vmatpush.msra.mxu0 0.0
      %215 = vmatpush.msra.mxu0 %v181
      %216 = vmatpush.msra.mxu0 %v180
      %217 = vmatmul.f32.gmra.mxu0 %v184
      %v218 = vpop.f32.mrf.mxu0
      %v219 = vadd.f32 0.0, %v218
      %220 = vmatmul.f32.gmra.mxu0 %v187
      %v221 = vpop.f32.mrf.mxu0
      %v222 = vadd.f32 0.0, %v221
      %223 = vmatmul.f32.gmra.mxu0 %v190
      %v224 = vpop.f32.mrf.mxu0
      %v225 = vadd.f32 0.0, %v224
      %226 = vmatmul.f32.gmra.mxu0 %v193
      %v227 = vpop.f32.mrf.mxu0
      %v228 = vadd.f32 0.0, %v227
      %229 = vmatmul.f32.gmra.mxu0 %v196
      %v230 = vpop.f32.mrf.mxu0
      %v231 = vadd.f32 0.0, %v230
      %232 = vmatmul.f32.gmra.mxu0 %v199
      %v233 = vpop.f32.mrf.mxu0
      %v234 = vadd.f32 0.0, %v233
      %235 = vdwg.mxu0
      %vm236 = vcmask 261120
      %237 = vst.msk [vmem:[%s172] sm:$0xff] %vm236, %v219
      %238 = vst.msk [vmem:[%s172 + $0x8] sm:$0xff] %vm236, %v222
      %239 = vst.msk [vmem:[%s172 + $0x10] sm:$0xff] %vm236, %v225
      %240 = vst.msk [vmem:[%s172 + $0x18] sm:$0xff] %vm236, %v228
      %241 = vst.msk [vmem:[%s172 + $0x20] sm:$0xff] %vm236, %v231
      %242 = vst.msk [vmem:[%s172 + $0x28] sm:$0xff] %vm236, %v234
      %v243 = vld [vmem:[%s2] sm:$0xff]
      %v244 = vld [vmem:[%s2 + $0x8] sm:$0xff]
      %v245 = vld [vmem:[%s2 + $0x10] sm:$0xff]
      %v246 = vld [vmem:[%s2 + $0x18] sm:$0xff]
      %v247 = vld [vmem:[%s2 + $0x20] sm:$0xff]
      %v248 = vld [vmem:[%s2 + $0x28] sm:$0xff]
      %vm249 = vcmask 392192
      %v251 = vsel %vm249, %v243, 0
      %v254 = vsel %vm249, %v244, 0
      %v257 = vsel %vm249, %v245, 0
      %v260 = vsel %vm249, %v246, 0
      %v263 = vsel %vm249, %v247, 0
      %v266 = vsel %vm249, %v248, 0
      %268 = vmatpush.msra.mxu0 0.0
      %269 = vmatpush.msra.mxu0 0.0
      %270 = vmatpush.msra.mxu0 0.0
      %271 = vmatpush.msra.mxu0 0.0
      %272 = vmatpush.msra.mxu0 0.0
      %273 = vmatpush.msra.mxu0 0.0
      %274 = vmatpush.msra.mxu0 0.0
      %275 = vmatpush.msra.mxu0 0.0
      %276 = vmatpush.msra.mxu0 0.0
      %277 = vmatpush.msra.mxu0 0.0
      %278 = vmatpush.msra.mxu0 %v234
      %279 = vmatpush.msra.mxu0 %v231
      %280 = vmatpush.msra.mxu0 %v228
      %281 = vmatpush.msra.mxu0 %v225
      %282 = vmatpush.msra.mxu0 %v222
      %283 = vmatpush.msra.mxu0 %v219
      %284 = vmatmul.f32.gmra.mxu0 %v251
      %v285 = vpop.f32.mrf.mxu0
      %v286 = vadd.f32 0.0, %v285
      %287 = vmatmul.f32.gmra.mxu0 %v254
      %v288 = vpop.f32.mrf.mxu0
      %v289 = vadd.f32 0.0, %v288
      %290 = vmatmul.f32.gmra.mxu0 %v257
      %v291 = vpop.f32.mrf.mxu0
      %v292 = vadd.f32 0.0, %v291
      %293 = vmatmul.f32.gmra.mxu0 %v260
      %v294 = vpop.f32.mrf.mxu0
      %v295 = vadd.f32 0.0, %v294
      %296 = vmatmul.f32.gmra.mxu0 %v263
      %v297 = vpop.f32.mrf.mxu0
      %v298 = vadd.f32 0.0, %v297
      %299 = vmatmul.f32.gmra.mxu0 %v266
      %v300 = vpop.f32.mrf.mxu0
      %v301 = vadd.f32 0.0, %v300
      %302 = vdwg.mxu0
      %309 = vrot.lane.b32.xlu0 %v286, 32
      %v310 = vpop.permute.xlu0 %309
      %311 = vrot.lane.b32.xlu0 %v289, 32
      %v312 = vpop.permute.xlu0 %311
      %313 = vrot.lane.b32.xlu0 %v292, 32
      %v314 = vpop.permute.xlu0 %313
      %315 = vrot.lane.b32.xlu0 %v295, 32
      %v316 = vpop.permute.xlu0 %315
      %317 = vrot.lane.b32.xlu0 %v298, 32
      %v318 = vpop.permute.xlu0 %317
      %319 = vrot.lane.b32.xlu0 %v301, 32
      %v320 = vpop.permute.xlu0 %319
      %vm327 = vcmask 523520
      %328 = vst.msk [vmem:[%s172] sm:$0xff] %vm327, %v310
      %329 = vst.msk [vmem:[%s172 + $0x8] sm:$0xff] %vm327, %v312
      %330 = vst.msk [vmem:[%s172 + $0x10] sm:$0xff] %vm327, %v314
      %331 = vst.msk [vmem:[%s172 + $0x18] sm:$0xff] %vm327, %v316
      %332 = vst.msk [vmem:[%s172 + $0x20] sm:$0xff] %vm327, %v318
      %333 = vst.msk [vmem:[%s172 + $0x28] sm:$0xff] %vm327, %v320
      %s334 = smul.u32 6, %s14
      %p335 = scmp.lt.s32.totalorder %s334, 11
      %s336 = scalar_select %p335, %s334, 11
      %s337 = smul.addr %s336, 8
      %s338 = scalar_lea.vmem %s3, %s337
      // Predicated region
      $region33: #{tpu_custom_call.1} parent=31 // pred_check
        %p339 = pneg %p100
      $region34: #{tpu_custom_call.1} parent=31 // pred_check_branch
        %341 = sbr.rel (%p339) target = $region36
      $region35: #{tpu_custom_call.1} parent=31 // pred_region
        %s342 = smul.u32 6, %s14
      $region36: #{tpu_custom_call.1} parent=31 // pred_fallthru
        _
    $region32: #{tpu_custom_call.1} parent=5 // pred_fallthru
      _
    %p343 = scmp.le.s32.totalorder 2, %s9
    // Predicated region
    $region37: #{tpu_custom_call.1} parent=5 // pred_check
      %p344 = pneg %p343
    $region38: #{tpu_custom_call.1} parent=5 // pred_check_branch
      %346 = sbr.rel (%p344) target = $region40
    $region39: #{tpu_custom_call.1} parent=5 // pred_region
      %s347 = ssub.s32 %s9, 2
      // Predicated region
      $region41: #{tpu_custom_call.1} parent=39 // pred_check
        %p348 = pneg %p106
      $region42: #{tpu_custom_call.1} parent=39 // pred_check_branch
        %350 = sbr.rel (%p348) target = $region44
      $region43: #{tpu_custom_call.1} parent=39 // pred_region
        %s351 = smul.u32 6, %s15
        %p352 = scmp.lt.s32.totalorder %s351, 11
        %s353 = scalar_select %p352, %s351, 11
        %s354 = smul.addr %s353, 8
        %s355 = scalar_lea.vmem %s3, %s354
      $region44: #{tpu_custom_call.1} parent=39 // pred_fallthru
        _
    $region40: #{tpu_custom_call.1} parent=5 // pred_fallthru
      _
  $region6: #{tpu_custom_call.1} parent=0 // loop_footer
    %s13 = sadd.s32 1, %s9
  $region7: #{tpu_custom_call.1} parent=0 // loop_footer_branch
    %8 = sbr.rel target = $region3
  $region8: #{tpu_custom_call.1} parent=0 // loop_exit
    _

// kernel: tpu_custom_call.1
$region0: #{tpu_custom_call.1}
  #allocation0 [shape = 'u32[]', space=smem, size = 0x4, offset = 0x4, fixed_abs, tag = 'smem constant byte address 0x4 - core index']
  #allocation1 [shape = 'u32[72,128]{1,0:T(1,128)}', space=vmem, size = 0x9000, scoped, tag = 'internal scratch']
  %s0 = inlined_call_operand.vmem [shape: f32[96,16], index: 0, kind: input, shape index: {}]
  %s1 = inlined_call_operand.vmem [shape: f32[16,32], index: 1, kind: input, shape index: {}]
  %s2 = inlined_call_operand.vmem [shape: f32[48,48], index: 2, kind: input, shape index: {}]
  %s3 = inlined_call_operand.vmem [shape: f32[96,64], index: 3, kind: output, shape index: {}]
  %s4 = sld [smem:[#allocation0]]
  $region45: #{tpu_custom_call.1} parent=0
    _
  %s6 = ssub.s32 1, %s4
  %s7 = scalar_select 0, %s6, %s4
  loop: start=0, step=1, limit=4
  $region2: #{tpu_custom_call.1} parent=0 // loop_pre_header
    _
  $region3: #{tpu_custom_call.1} parent=0 // loop_header
    %s9 = sphi 0, %s13
    %p10 = scmp.ge.s32.totalorder %s9, 4
    %s19 = sphi 0, %s21
    %s22 = sphi 0, %s19
    %s23 = sphi 0, %s22
    %s39 = sphi 0, %s23
    %s43 = sphi 0, %s43
    %s45 = sphi 0, %s43
    %s46 = sphi 0, %s45
    %s60 = sphi 0, %s46
    %s64 = sphi 0, %s64
    %s66 = sphi 0, %s64
    %s67 = sphi 0, %s66
    %s81 = sphi 0, %s67
    %s87 = sphi 0, %s89
    %s90 = sphi 0, %s87
    %s91 = sphi 0, %s90
    %s107 = sphi 0, %s91
  $region4: #{tpu_custom_call.1} parent=0 // loop_header_branch
    %12 = sbr.rel (%p10) target = $region8
  $region5: #{tpu_custom_call.1} parent=0 // loop_body
    %s14 = ssub.s32 %s9, 1
    %s15 = ssub.s32 %s9, 2
    %s16 = sadd.s32 %s9, 1
    %s17 = ssub.s32 %s9, %s16
    %p18 = scmp.eq.s32.totalorder %s17, 0
    %s20 = sadd.s32 %s19, 1
    %s21 = scalar_select %p18, %s19, %s20
    %p24 = pneg %p18
    %p25 = scmp.eq.s32.totalorder %s9, 1
    %p26 = por %p24, %p25
    %p27 = scmp.ne.s32.totalorder %s19, %s22
    %p28 = scmp.eq.s32.totalorder %s9, 0
    %p29 = por %p27, %p28
    %p30 = scmp.ne.s32.totalorder %s19, %s22
    %p31 = scmp.eq.s32.totalorder %s14, 1
    %p32 = por %p30, %p31
    %p33 = scmp.ne.s32.totalorder %s22, %s23
    %p34 = scmp.eq.s32.totalorder %s14, 0
    %p35 = por %p33, %p34
    %p36 = scmp.ne.s32.totalorder %s22, %s23
    %p37 = scmp.eq.s32.totalorder %s15, 1
    %p38 = por %p36, %p37
    %p40 = scmp.ne.s32.totalorder %s23, %s39
    %p41 = scmp.eq.s32.totalorder %s15, 0
    %p42 = por %p40, %p41
    %s44 = sadd.s32 %s43, 1
    %p47 = scmp.eq.s32.totalorder %s9, 1
    %p48 = scmp.ne.s32.totalorder %s43, %s45
    %p49 = scmp.eq.s32.totalorder %s9, 0
    %p50 = por %p48, %p49
    %p51 = scmp.ne.s32.totalorder %s43, %s45
    %p52 = scmp.eq.s32.totalorder %s14, 1
    %p53 = por %p51, %p52
    %p54 = scmp.ne.s32.totalorder %s45, %s46
    %p55 = scmp.eq.s32.totalorder %s14, 0
    %p56 = por %p54, %p55
    %p57 = scmp.ne.s32.totalorder %s45, %s46
    %p58 = scmp.eq.s32.totalorder %s15, 1
    %p59 = por %p57, %p58
    %p61 = scmp.ne.s32.totalorder %s46, %s60
    %p62 = scmp.eq.s32.totalorder %s15, 0
    %p63 = por %p61, %p62
    %s65 = sadd.s32 %s64, 1
    %p68 = scmp.eq.s32.totalorder %s9, 1
    %p69 = scmp.ne.s32.totalorder %s64, %s66
    %p70 = scmp.eq.s32.totalorder %s9, 0
    %p71 = por %p69, %p70
    %p72 = scmp.ne.s32.totalorder %s64, %s66
    %p73 = scmp.eq.s32.totalorder %s14, 1
    %p74 = por %p72, %p73
    %p75 = scmp.ne.s32.totalorder %s66, %s67
    %p76 = scmp.eq.s32.totalorder %s14, 0
    %p77 = por %p75, %p76
    %p78 = scmp.ne.s32.totalorder %s66, %s67
    %p79 = scmp.eq.s32.totalorder %s15, 1
    %p80 = por %p78, %p79
    %p82 = scmp.ne.s32.totalorder %s67, %s81
    %p83 = scmp.eq.s32.totalorder %s15, 0
    %p84 = por %p82, %p83
    %s85 = ssub.s32 %s9, %s16
    %p86 = scmp.eq.s32.totalorder %s85, 0
    %s88 = sadd.s32 %s87, 1
    %s89 = scalar_select %p86, %s87, %s88
    %p92 = pneg %p86
    %p93 = scmp.eq.s32.totalorder %s9, 1
    %p94 = por %p92, %p93
    %p95 = scmp.ne.s32.totalorder %s87, %s90
    %p96 = scmp.eq.s32.totalorder %s9, 0
    %p97 = por %p95, %p96
    %p98 = scmp.ne.s32.totalorder %s87, %s90
    %p99 = scmp.eq.s32.totalorder %s14, 1
    %p100 = por %p98, %p99
    %p101 = scmp.ne.s32.totalorder %s90, %s91
    %p102 = scmp.eq.s32.totalorder %s14, 0
    %p103 = por %p101, %p102
    %p104 = scmp.ne.s32.totalorder %s90, %s91
    %p105 = scmp.eq.s32.totalorder %s15, 1
    %p106 = por %p104, %p105
    %p108 = scmp.ne.s32.totalorder %s91, %s107
    %p109 = scmp.eq.s32.totalorder %s15, 0
    %p110 = por %p108, %p109
    %p111 = scmp.le.s32.totalorder 1, %s9
    %p112 = scmp.lt.s32.totalorder %s9, 3
    %p113 = pnand %p111, %p112
    %p114 = pneg %p113
    // Predicated region
    $region9: #{tpu_custom_call.1} parent=5 // pred_check
      _
    $region10: #{tpu_custom_call.1} parent=5 // pred_check_branch
      %116 = sbr.rel (%p113) target = $region12
    $region11: #{tpu_custom_call.1} parent=5 // pred_region
      %s117 = ssub.s32 %s9, 1
      // Predicated region
      $region13: #{tpu_custom_call.1} parent=11 // pred_check
        %p118 = pneg %p56
      $region14: #{tpu_custom_call.1} parent=11 // pred_check_branch
        %120 = sbr.rel (%p118) target = $region16
      $region15: #{tpu_custom_call.1} parent=11 // pred_region
        _
      $region16: #{tpu_custom_call.1} parent=11 // pred_fallthru
        _
      // Predicated region
      $region17: #{tpu_custom_call.1} parent=11 // pred_check
        %p121 = pneg %p77
      $region18: #{tpu_custom_call.1} parent=11 // pred_check_branch
        %123 = sbr.rel (%p121) target = $region20
      $region19: #{tpu_custom_call.1} parent=11 // pred_region
        _
      $region20: #{tpu_custom_call.1} parent=11 // pred_fallthru
        _
    $region12: #{tpu_custom_call.1} parent=5 // pred_fallthru
      _
    %p124 = scmp.lt.s32.totalorder %s9, 2
    // Predicated region
    $region21: #{tpu_custom_call.1} parent=5 // pred_check
      %p125 = pneg %p124
    $region22: #{tpu_custom_call.1} parent=5 // pred_check_branch
      %127 = sbr.rel (%p125) target = $region24
    $region23: #{tpu_custom_call.1} parent=5 // pred_region
      // Predicated region
      $region25: #{tpu_custom_call.1} parent=23 // pred_check
        %p128 = pneg %p29
      $region26: #{tpu_custom_call.1} parent=23 // pred_check_branch
        %130 = sbr.rel (%p128) target = $region28
      $region27: #{tpu_custom_call.1} parent=23 // pred_region
        %s131 = smul.u32 6, %s9
        %p132 = scmp.lt.s32.totalorder %s131, 11
        %s133 = scalar_select %p132, %s131, 11
        %s134 = smul.addr %s133, 8
        %s135 = scalar_lea.vmem %s0, %s134
        %s136 = smul.u32 6, %s9
      $region28: #{tpu_custom_call.1} parent=23 // pred_fallthru
        _
    $region24: #{tpu_custom_call.1} parent=5 // pred_fallthru
      _
    %p137 = scmp.le.s32.totalorder 1, %s9
    %p138 = scmp.lt.s32.totalorder %s9, 3
    %p139 = pnand %p137, %p138
    %p140 = pneg %p139
    // Predicated region
    $region29: #{tpu_custom_call.1} parent=5 // pred_check
      _
    $region30: #{tpu_custom_call.1} parent=5 // pred_check_branch
      %142 = sbr.rel (%p139) target = $region32
    $region31: #{tpu_custom_call.1} parent=5 // pred_region
      %s143 = ssub.s32 %s9, 1
      %s144 = smul.u32 6, %s14
      %p145 = scmp.lt.s32.totalorder %s144, 11
      %s146 = scalar_select %p145, %s144, 11
      %s147 = smul.addr %s146, 8
      %s148 = scalar_lea.vmem %s0, %s147
      %p149 = pneg %p35
      %p150 = pneg %p32
      %p151 = pneg %p56
      %p152 = pneg %p53
      %p153 = pneg %p77
      %p154 = pneg %p74
      %p155 = pneg %p103
      %p156 = pneg %p100
      %s157 = smul.u32 6, %s14
      %p158 = scmp.lt.s32.totalorder %s157, 11
      %s159 = scalar_select %p158, %s157, 11
      %s160 = smul.addr %s159, 8
      %s161 = scalar_lea.vmem %s3, %s160
      %s162 = smul.u32 6, %s14
      %p163 = scmp.lt.s32.totalorder %s162, 11
      %s164 = scalar_select %p163, %s162, 11
      %s165 = smul.addr %s164, 8
      %s166 = scalar_lea.vmem %s0, %s165
      %s167 = smul.u32 6, %s14
      %s168 = smul.u32 6, %s14
      %p169 = scmp.lt.s32.totalorder %s168, 11
      %s170 = scalar_select %p169, %s168, 11
      %s171 = smul.addr %s170, 8
      %s172 = scalar_lea.vmem %s3, %s171
      %s173 = smul.u32 6, %s14
      %v174 = vld [vmem:[%s166] sm:$0xff]
      %v175 = vld [vmem:[%s166 + $0x8] sm:$0xff]
      %v176 = vld [vmem:[%s166 + $0x10] sm:$0xff]
      %v177 = vld [vmem:[%s166 + $0x18] sm:$0xff]
      %v178 = vld [vmem:[%s166 + $0x20] sm:$0xff]
      %v179 = vld [vmem:[%s166 + $0x28] sm:$0xff]
      %v180 = vld [vmem:[%s1] sm:$0xff]
      %v181 = vld [vmem:[%s1 + $0x8] sm:$0xff]
      %vm182 = vcmask 130048
      %v184 = vsel %vm182, %v174, 0
      %v187 = vsel %vm182, %v175, 0
      %v190 = vsel %vm182, %v176, 0
      %v193 = vsel %vm182, %v177, 0
      %v196 = vsel %vm182, %v178, 0
      %v199 = vsel %vm182, %v179, 0
      %201 = vmatpush.msra.mxu0 0.0
      %202 = vmatpush.msra.mxu0 0.0
      %203 = vmatpush.msra.mxu0 0.0
      %204 = vmatpush.msra.mxu0 0.0
      %205 = vmatpush.msra.mxu0 0.0
      %206 = vmatpush.msra.mxu0 0.0
      %207 = vmatpush.msra.mxu0 0.0
      %208 = vmatpush.msra.mxu0 0.0
      %209 = vmatpush.msra.mxu0 0.0
      %210 = vmatpush.msra.mxu0 0.0
      %211 = vmatpush.msra.mxu0 0.0
      %212 = vmatpush.msra.mxu0 0.0
      %213 = vmatpush.msra.mxu0 0.0
      %214 = vmatpush.msra.mxu0 0.0
      %215 = vmatpush.msra.mxu0 %v181
      %216 = vmatpush.msra.mxu0 %v180
      %217 = vmatmul.f32.gmra.mxu0 %v184
      %v218 = vpop.f32.mrf.mxu0
      %v219 = vadd.f32 0.0, %v218
      %220 = vmatmul.f32.gmra.mxu0 %v187
      %v221 = vpop.f32.mrf.mxu0
      %v222 = vadd.f32 0.0, %v221
      %223 = vmatmul.f32.gmra.mxu0 %v190
      %v224 = vpop.f32.mrf.mxu0
      %v225 = vadd.f32 0.0, %v224
      %226 = vmatmul.f32.gmra.mxu0 %v193
      %v227 = vpop.f32.mrf.mxu0
      %v228 = vadd.f32 0.0, %v227
      %229 = vmatmul.f32.gmra.mxu0 %v196
      %v230 = vpop.f32.mrf.mxu0
      %v231 = vadd.f32 0.0, %v230
      %232 = vmatmul.f32.gmra.mxu0 %v199
      %v233 = vpop.f32.mrf.mxu0
      %v234 = vadd.f32 0.0, %v233
      %235 = vdwg.mxu0
      %vm236 = vcmask 261120
      %237 = vst.msk [vmem:[%s172] sm:$0xff] %vm236, %v219
      %238 = vst.msk [vmem:[%s172 + $0x8] sm:$0xff] %vm236, %v222
      %239 = vst.msk [vmem:[%s172 + $0x10] sm:$0xff] %vm236, %v225
      %240 = vst.msk [vmem:[%s172 + $0x18] sm:$0xff] %vm236, %v228
      %241 = vst.msk [vmem:[%s172 + $0x20] sm:$0xff] %vm236, %v231
      %242 = vst.msk [vmem:[%s172 + $0x28] sm:$0xff] %vm236, %v234
      %v243 = vld [vmem:[%s2] sm:$0xff]
      %v244 = vld [vmem:[%s2 + $0x8] sm:$0xff]
      %v245 = vld [vmem:[%s2 + $0x10] sm:$0xff]
      %v246 = vld [vmem:[%s2 + $0x18] sm:$0xff]
      %v247 = vld [vmem:[%s2 + $0x20] sm:$0xff]
      %v248 = vld [vmem:[%s2 + $0x28] sm:$0xff]
      %vm249 = vcmask 392192
      %v251 = vsel %vm249, %v243, 0
      %v254 = vsel %vm249, %v244, 0
      %v257 = vsel %vm249, %v245, 0
      %v260 = vsel %vm249, %v246, 0
      %v263 = vsel %vm249, %v247, 0
      %v266 = vsel %vm249, %v248, 0
      %268 = vmatpush.msra.mxu0 0.0
      %269 = vmatpush.msra.mxu0 0.0
      %270 = vmatpush.msra.mxu0 0.0
      %271 = vmatpush.msra.mxu0 0.0
      %272 = vmatpush.msra.mxu0 0.0
      %273 = vmatpush.msra.mxu0 0.0
      %274 = vmatpush.msra.mxu0 0.0
      %275 = vmatpush.msra.mxu0 0.0
      %276 = vmatpush.msra.mxu0 0.0
      %277 = vmatpush.msra.mxu0 0.0
      %278 = vmatpush.msra.mxu0 %v234
      %279 = vmatpush.msra.mxu0 %v231
      %280 = vmatpush.msra.mxu0 %v228
      %281 = vmatpush.msra.mxu0 %v225
      %282 = vmatpush.msra.mxu0 %v222
      %283 = vmatpush.msra.mxu0 %v219
      %284 = vmatmul.f32.gmra.mxu0 %v251
      %v285 = vpop.f32.mrf.mxu0
      %v286 = vadd.f32 0.0, %v285
      %287 = vmatmul.f32.gmra.mxu0 %v254
      %v288 = vpop.f32.mrf.mxu0
      %v289 = vadd.f32 0.0, %v288
      %290 = vmatmul.f32.gmra.mxu0 %v257
      %v291 = vpop.f32.mrf.mxu0
      %v292 = vadd.f32 0.0, %v291
      %293 = vmatmul.f32.gmra.mxu0 %v260
      %v294 = vpop.f32.mrf.mxu0
      %v295 = vadd.f32 0.0, %v294
      %296 = vmatmul.f32.gmra.mxu0 %v263
      %v297 = vpop.f32.mrf.mxu0
      %v298 = vadd.f32 0.0, %v297
      %299 = vmatmul.f32.gmra.mxu0 %v266
      %v300 = vpop.f32.mrf.mxu0
      %v301 = vadd.f32 0.0, %v300
      %302 = vdwg.mxu0
      %309 = vrot.lane.b32.xlu0 %v286, 32
      %v310 = vpop.permute.xlu0 %309
      %311 = vrot.lane.b32.xlu0 %v289, 32
      %v312 = vpop.permute.xlu0 %311
      %313 = vrot.lane.b32.xlu0 %v292, 32
      %v314 = vpop.permute.xlu0 %313
      %315 = vrot.lane.b32.xlu0 %v295, 32
      %v316 = vpop.permute.xlu0 %315
      %317 = vrot.lane.b32.xlu0 %v298, 32
      %v318 = vpop.permute.xlu0 %317
      %319 = vrot.lane.b32.xlu0 %v301, 32
      %v320 = vpop.permute.xlu0 %319
      %vm327 = vcmask 523520
      %328 = vst.msk [vmem:[%s172] sm:$0xff] %vm327, %v310
      %329 = vst.msk [vmem:[%s172 + $0x8] sm:$0xff] %vm327, %v312
      %330 = vst.msk [vmem:[%s172 + $0x10] sm:$0xff] %vm327, %v314
      %331 = vst.msk [vmem:[%s172 + $0x18] sm:$0xff] %vm327, %v316
      %332 = vst.msk [vmem:[%s172 + $0x20] sm:$0xff] %vm327, %v318
      %333 = vst.msk [vmem:[%s172 + $0x28] sm:$0xff] %vm327, %v320
      %s334 = smul.u32 6, %s14
      %p335 = scmp.lt.s32.totalorder %s334, 11
      %s336 = scalar_select %p335, %s334, 11
      %s337 = smul.addr %s336, 8
      %s338 = scalar_lea.vmem %s3, %s337
      // Predicated region
      $region33: #{tpu_custom_call.1} parent=31 // pred_check
        %p339 = pneg %p100
      $region34: #{tpu_custom_call.1} parent=31 // pred_check_branch
        %341 = sbr.rel (%p339) target = $region36
      $region35: #{tpu_custom_call.1} parent=31 // pred_region
        %s342 = smul.u32 6, %s14
      $region36: #{tpu_custom_call.1} parent=31 // pred_fallthru
        _
    $region32: #{tpu_custom_call.1} parent=5 // pred_fallthru
      _
    %p343 = scmp.le.s32.totalorder 2, %s9
    // Predicated region
    $region37: #{tpu_custom_call.1} parent=5 // pred_check
      %p344 = pneg %p343
    $region38: #{tpu_custom_call.1} parent=5 // pred_check_branch
      %346 = sbr.rel (%p344) target = $region40
    $region39: #{tpu_custom_call.1} parent=5 // pred_region
      %s347 = ssub.s32 %s9, 2
      // Predicated region
      $region41: #{tpu_custom_call.1} parent=39 // pred_check
        %p348 = pneg %p106
      $region42: #{tpu_custom_call.1} parent=39 // pred_check_branch
        %350 = sbr.rel (%p348) target = $region44
      $region43: #{tpu_custom_call.1} parent=39 // pred_region
        %s351 = smul.u32 6, %s15
        %p352 = scmp.lt.s32.totalorder %s351, 11
        %s353 = scalar_select %p352, %s351, 11
        %s354 = smul.addr %s353, 8
        %s355 = scalar_lea.vmem %s3, %s354
      $region44: #{tpu_custom_call.1} parent=39 // pred_fallthru
        _
    $region40: #{tpu_custom_call.1} parent=5 // pred_fallthru
      _
  $region6: #{tpu_custom_call.1} parent=0 // loop_footer
    %s13 = sadd.s32 1, %s9
  $region7: #{tpu_custom_call.1} parent=0 // loop_footer_branch
    %8 = sbr.rel target = $region3
  $region8: #{tpu_custom_call.1} parent=0 // loop_exit
    _

</llo_original>
